<compile_context>
chip_gen: v5e
topology: v5e:2x2
jax: 0.10.0
libtpu: 0.0.40
codegen_flags: <defaults>
</compile_context>

<pallas_src>
import jax
import jax.numpy as jnp
from jax.experimental import pallas as pl
from jax.experimental.pallas import tpu as pltpu


def _round_up(x, m):
    return (x + m - 1) // m * m


def resnet_forward(x, params, *, batch_tile=8):
    """x: [N, C_in, H, W] float32 -> logits [N, num_classes] float32."""
    conv_w, conv_b, fc_w, fc_b = params
    N, C_in, H, W = x.shape
    C_emb = conv_w.shape[0]
    num_classes = fc_w.shape[0]

    HW = H * W
    K9 = 9 * C_in
    K_PAD = _round_up(K9, 8)             # sublane-aligned contraction dim
    C_EMB_PAD = _round_up(C_emb, 128)    # lane-dense embedding width
    NC_PAD = _round_up(num_classes, 128)

    B = max(1, min(batch_tile, N))       # images per grid step
    N_PAD = _round_up(N, B)
    ROWS = B * HW                        # conv rows per grid step

    # ---- host-side layout prep (pure data movement; ~40 KB/image) ----
    # im2col: patches[n, h*W+w, (kh*3+kw)*C_in + c] = x_padded[n, h+kh, w+kw, c]
    x_nhwc = jnp.transpose(x, (0, 2, 3, 1))                       # [N, H, W, C_in]
    xp = jnp.pad(x_nhwc, ((0, 0), (1, 1), (1, 1), (0, 0)))        # [N, H+2, W+2, C_in]
    taps = [xp[:, kh:kh + H, kw:kw + W, :] for kh in range(3) for kw in range(3)]
    patches = jnp.stack(taps, axis=3).reshape(N, HW, K9)          # [N, HW, 9*C_in]
    patches = jnp.pad(patches, ((0, N_PAD - N), (0, 0), (0, K_PAD - K9)))
    patches = patches.reshape(N_PAD * HW, K_PAD)                  # flat 2-D, rows 8-aligned

    # conv weight [C_emb, C_in, 3, 3] -> single [K_PAD, C_EMB_PAD] slab (tap-major, chan-minor)
    wc = jnp.transpose(conv_w, (2, 3, 1, 0)).reshape(K9, C_emb)
    wc = jnp.pad(wc, ((0, K_PAD - K9), (0, C_EMB_PAD - C_emb)))
    bc = jnp.pad(conv_b, (0, C_EMB_PAD - C_emb)).reshape(1, C_EMB_PAD)

    # Block-diagonal masked-mean matrix: pooled = pool @ relu(conv) for all B images at once.
    row_img = jnp.arange(ROWS, dtype=jnp.int32) // HW
    pool = (row_img[None, :] == jnp.arange(B, dtype=jnp.int32)[:, None])
    pool = pool.astype(jnp.float32) / float(HW)                   # [B, B*HW]

    wf = jnp.pad(fc_w.T.astype(jnp.float32),
                 ((0, C_EMB_PAD - C_emb), (0, NC_PAD - num_classes)))
    bf = jnp.pad(fc_b, (0, NC_PAD - num_classes)).reshape(1, NC_PAD)

    def kernel(p_ref, wc_ref, bc_ref, pool_ref, wf_ref, bf_ref, o_ref):
        # 3x3 "same" conv for the whole batch tile as ONE K=K_PAD matmul on the MXU.
        conv = jnp.dot(p_ref[...], wc_ref[...],
                       preferred_element_type=jnp.float32)        # [B*HW, C_EMB_PAD]
        act = jnp.maximum(conv + bc_ref[...], 0.0)                 # bias + ReLU (fused pass)
        # Global average pool for all B images: block-diagonal mean matrix, one MXU matmul.
        pooled = jnp.dot(pool_ref[...], act,
                         preferred_element_type=jnp.float32)       # [B, C_EMB_PAD]
        logits = jnp.dot(pooled, wf_ref[...],
                         preferred_element_type=jnp.float32) + bf_ref[...]
        o_ref[...] = logits.astype(o_ref.dtype)                    # dense (B, NC_PAD) store

    steps = N_PAD // B
    flops = steps * 2 * (ROWS * K_PAD * C_EMB_PAD
                         + B * ROWS * C_EMB_PAD
                         + B * C_EMB_PAD * NC_PAD)
    bytes_accessed = 4 * (N_PAD * HW * K_PAD + wc.size + bc.size + pool.size
                          + wf.size + bf.size + N_PAD * NC_PAD)

    out = pl.pallas_call(
        kernel,
        out_shape=jax.ShapeDtypeStruct((N_PAD, NC_PAD), jnp.float32),
        grid_spec=pltpu.PrefetchScalarGridSpec(
            num_scalar_prefetch=0,
            grid=(steps,),
            in_specs=[
                pl.BlockSpec((ROWS, K_PAD), lambda i: (i, 0)),        # streamed patch tile
                pl.BlockSpec((K_PAD, C_EMB_PAD), lambda i: (0, 0)),   # resident conv weight
                pl.BlockSpec((1, C_EMB_PAD), lambda i: (0, 0)),       # resident conv bias
                pl.BlockSpec((B, ROWS), lambda i: (0, 0)),            # resident pool matrix
                pl.BlockSpec((C_EMB_PAD, NC_PAD), lambda i: (0, 0)),  # resident FC weight
                pl.BlockSpec((1, NC_PAD), lambda i: (0, 0)),          # resident FC bias
            ],
            out_specs=pl.BlockSpec((B, NC_PAD), lambda i: (i, 0)),
        ),
        compiler_params=pltpu.CompilerParams(
            dimension_semantics=("parallel",)),
        cost_estimate=pl.CostEstimate(flops=flops, transcendentals=0,
                                      bytes_accessed=bytes_accessed),
    )(patches, wc, bc, pool, wf, bf)

    return out[:N, :num_classes]


def _reference_forward(x, params):
    """Pure-JAX reference (for sanity check only)."""
    conv_w, conv_b, fc_w, fc_b = params
    y = jax.lax.conv_general_dilated(
        x, conv_w, window_strides=(1, 1), padding="SAME",
        dimension_numbers=("NCHW", "OIHW", "NCHW"),
        precision=jax.lax.Precision.HIGHEST)
    y = jax.nn.relu(y + conv_b[None, :, None, None])
    pooled = jnp.mean(y, axis=(2, 3))                   # [N, C_emb]
    return jnp.dot(pooled, fc_w.T, precision=jax.lax.Precision.HIGHEST) + fc_b


if __name__ == "__main__":
    # Small deterministic setup (synthetic params; no checkpoint loading).
    N, C_in, H, W = 2, 4, 16, 16
    C_emb, num_classes = 32, 10

    key = jax.random.PRNGKey(0)
    k1, k2, k3, k4, k5 = jax.random.split(key, 5)

    x = jax.random.normal(k1, (N, C_in, H, W), dtype=jnp.float32)

    conv_w = jax.random.normal(k2, (C_emb, C_in, 3, 3), dtype=jnp.float32) * 0.1
    conv_b = jax.random.normal(k3, (C_emb,), dtype=jnp.float32) * 0.1
    fc_w = jax.random.normal(k4, (num_classes, C_emb), dtype=jnp.float32) * 0.1
    fc_b = jax.random.normal(k5, (num_classes,), dtype=jnp.float32) * 0.1
    params = (conv_w, conv_b, fc_w, fc_b)

    out = jax.jit(resnet_forward)(x, params)
    out = jax.block_until_ready(out)

    ref = _reference_forward(x, params)
    assert out.shape == (N, num_classes), out.shape
    assert jnp.allclose(out, ref, atol=1e-4, rtol=1e-4), "mismatch vs reference"

    print("KERNEL_OK")
</pallas_src>

<mosaic_0001>
module attributes {stable_mosaic.version = 11 : i64} {
  func.func @kernel(%arg0: i32, %arg1: memref<512x40xf32, #tpu.memory_space<vmem>>, %arg2: memref<40x128xf32, #tpu.memory_space<vmem>>, %arg3: memref<1x128xf32, #tpu.memory_space<vmem>>, %arg4: memref<2x512xf32, #tpu.memory_space<vmem>>, %arg5: memref<128x128xf32, #tpu.memory_space<vmem>>, %arg6: memref<1x128xf32, #tpu.memory_space<vmem>>, %arg7: memref<2x128xf32, #tpu.memory_space<vmem>>) attributes {dimension_semantics = [#tpu.dimension_semantics<parallel>], iteration_bounds = array<i64: 1>, scalar_prefetch = 0 : i64, scratch_operands = 0 : i64, tpu.core_type = #tpu.core_type<tc>, window_params = [{transform_indices = @transform_0, window_bounds = array<i64: 512, 40>}, {pipeline_mode = #tpu.pipeline_mode<synchronous>, transform_indices = @transform_1, window_bounds = array<i64: 40, 128>}, {pipeline_mode = #tpu.pipeline_mode<synchronous>, transform_indices = @transform_2, window_bounds = array<i64: 1, 128>}, {pipeline_mode = #tpu.pipeline_mode<synchronous>, transform_indices = @transform_3, window_bounds = array<i64: 2, 512>}, {pipeline_mode = #tpu.pipeline_mode<synchronous>, transform_indices = @transform_4, window_bounds = array<i64: 128, 128>}, {pipeline_mode = #tpu.pipeline_mode<synchronous>, transform_indices = @transform_5, window_bounds = array<i64: 1, 128>}, {transform_indices = @transform_6, window_bounds = array<i64: 2, 128>}]} {
    %c0 = arith.constant 0 : index
    %c0_0 = arith.constant 0 : index
    %0 = vector.load %arg1[%c0, %c0_0] : memref<512x40xf32, #tpu.memory_space<vmem>>, vector<512x40xf32>
    %c0_1 = arith.constant 0 : index
    %c0_2 = arith.constant 0 : index
    %1 = vector.load %arg2[%c0_1, %c0_2] : memref<40x128xf32, #tpu.memory_space<vmem>>, vector<40x128xf32>
    %cst = arith.constant dense<0.000000e+00> : vector<512x128xf32>
    %2 = tpu.matmul %0, %1, %cst {dimension_numbers = #tpu.dot_dimension_numbers<[1], [0], [0], [1], [0, 0, 1, 1], [], []>} : vector<512x40xf32>, vector<40x128xf32>, vector<512x128xf32> -> vector<512x128xf32>
    %c0_3 = arith.constant 0 : index
    %c0_4 = arith.constant 0 : index
    %3 = vector.load %arg3[%c0_3, %c0_4] : memref<1x128xf32, #tpu.memory_space<vmem>>, vector<1x128xf32>
    %4 = vector.broadcast %3 : vector<1x128xf32> to vector<512x128xf32>
    %5 = arith.addf %2, %4 : vector<512x128xf32>
    %cst_5 = arith.constant 0.000000e+00 : f32
    %6 = vector.broadcast %cst_5 : f32 to vector<512x128xf32>
    %7 = arith.maximumf %5, %6 : vector<512x128xf32>
    %c0_6 = arith.constant 0 : index
    %c0_7 = arith.constant 0 : index
    %8 = vector.load %arg4[%c0_6, %c0_7] : memref<2x512xf32, #tpu.memory_space<vmem>>, vector<2x512xf32>
    %cst_8 = arith.constant dense<0.000000e+00> : vector<2x128xf32>
    %9 = tpu.matmul %8, %7, %cst_8 {dimension_numbers = #tpu.dot_dimension_numbers<[1], [0], [0], [1], [0, 0, 1, 1], [], []>} : vector<2x512xf32>, vector<512x128xf32>, vector<2x128xf32> -> vector<2x128xf32>
    %c0_9 = arith.constant 0 : index
    %c0_10 = arith.constant 0 : index
    %10 = vector.load %arg5[%c0_9, %c0_10] : memref<128x128xf32, #tpu.memory_space<vmem>>, vector<128x128xf32>
    %cst_11 = arith.constant dense<0.000000e+00> : vector<2x128xf32>
    %11 = tpu.matmul %9, %10, %cst_11 {dimension_numbers = #tpu.dot_dimension_numbers<[1], [0], [0], [1], [0, 0, 1, 1], [], []>} : vector<2x128xf32>, vector<128x128xf32>, vector<2x128xf32> -> vector<2x128xf32>
    %c0_12 = arith.constant 0 : index
    %c0_13 = arith.constant 0 : index
    %12 = vector.load %arg6[%c0_12, %c0_13] : memref<1x128xf32, #tpu.memory_space<vmem>>, vector<1x128xf32>
    %13 = vector.broadcast %12 : vector<1x128xf32> to vector<2x128xf32>
    %14 = arith.addf %11, %13 : vector<2x128xf32>
    %c0_14 = arith.constant 0 : index
    %c0_15 = arith.constant 0 : index
    %15 = vector.load %arg7[%c0_14, %c0_15] : memref<2x128xf32, #tpu.memory_space<vmem>>, vector<2x128xf32>
    tpu.vector_store %arg7[%c0_14, %c0_15], %14 {strides = array<i32>} : memref<2x128xf32, #tpu.memory_space<vmem>>, vector<2x128xf32>,
    return
  }
  func.func @transform_0(%arg0: i32) -> (i32, i32) {
    %c0_i32 = arith.constant 0 : i32
    %c0_i32_0 = arith.constant 0 : i32
    return %arg0, %c0_i32 : i32, i32
  }
  func.func @transform_1(%arg0: i32) -> (i32, i32) {
    %c0_i32 = arith.constant 0 : i32
    %c0_i32_0 = arith.constant 0 : i32
    %c0_i32_1 = arith.constant 0 : i32
    return %c0_i32, %c0_i32_0 : i32, i32
  }
  func.func @transform_2(%arg0: i32) -> (i32, i32) {
    %c0_i32 = arith.constant 0 : i32
    %c0_i32_0 = arith.constant 0 : i32
    %c0_i32_1 = arith.constant 0 : i32
    return %c0_i32, %c0_i32_0 : i32, i32
  }
  func.func @transform_3(%arg0: i32) -> (i32, i32) {
    %c0_i32 = arith.constant 0 : i32
    %c0_i32_0 = arith.constant 0 : i32
    %c0_i32_1 = arith.constant 0 : i32
    return %c0_i32, %c0_i32_0 : i32, i32
  }
  func.func @transform_4(%arg0: i32) -> (i32, i32) {
    %c0_i32 = arith.constant 0 : i32
    %c0_i32_0 = arith.constant 0 : i32
    %c0_i32_1 = arith.constant 0 : i32
    return %c0_i32, %c0_i32_0 : i32, i32
  }
  func.func @transform_5(%arg0: i32) -> (i32, i32) {
    %c0_i32 = arith.constant 0 : i32
    %c0_i32_0 = arith.constant 0 : i32
    %c0_i32_1 = arith.constant 0 : i32
    return %c0_i32, %c0_i32_0 : i32, i32
  }
  func.func @transform_6(%arg0: i32) -> (i32, i32) {
    %c0_i32 = arith.constant 0 : i32
    %c0_i32_0 = arith.constant 0 : i32
    return %arg0, %c0_i32 : i32, i32
  }
}

</mosaic_0001>

<llo_original>
// kernel: resnet_forward.1
$region0: #{resnet_forward.1}
  #allocation0 [shape = 'u32[]', space=smem, size = 0x4, offset = 0x4, fixed_abs, tag = 'smem constant byte address 0x4 - core index']
  #allocation1 [shape = 'u32[72,128]{1,0:T(1,128)}', space=vmem, size = 0x9000, scoped, tag = 'internal scratch']
  %s0 = inlined_call_operand.vmem [shape: f32[512,40], index: 0, kind: input, shape index: {}]
  %s1 = inlined_call_operand.vmem [shape: f32[40,128], index: 1, kind: input, shape index: {}]
  %s2 = inlined_call_operand.vmem [shape: f32[1,128], index: 2, kind: input, shape index: {}]
  %s3 = inlined_call_operand.vmem [shape: f32[2,512], index: 3, kind: input, shape index: {}]
  %s4 = inlined_call_operand.vmem [shape: f32[128,128], index: 4, kind: input, shape index: {}]
  %s5 = inlined_call_operand.vmem [shape: f32[1,128], index: 5, kind: input, shape index: {}]
  %s6 = inlined_call_operand.hbm [shape: f32[2,128], index: 6, kind: output, shape index: {}]
  %s7 = sld [smem:[#allocation0]]
  $region34: #{resnet_forward.1} parent=0
    _
  %s9 = ssub.s32 1, %s7
  %s10 = scalar_select 0, %s9, %s7
  $region1: #{resnet_forward.1} parent=0
    #allocation2 [shape = 'u8[1024]{0}', space=vmem, size = 0x400, scoped, tag = 'output window, operand 0, single buffered']
    #allocation3 [shape = 's32[1]{0}', space=sflag, size = 0x4, scoped, tag = 'scoped memory for resnet_forward.1']
    %11 = vsyncpa [#allocation3], 0
    // Predicated region
    $region2: #{resnet_forward.1} parent=1 // pred_check
      _
    $region3: #{resnet_forward.1} parent=1 // pred_check_branch
      %13 = sbr.rel (0) target = $region5
    $region4: #{resnet_forward.1} parent=1 // pred_region
      _
    $region5: #{resnet_forward.1} parent=1 // pred_fallthru
      _
    // Predicated region
    $region6: #{resnet_forward.1} parent=1 // pred_check
      _
    $region7: #{resnet_forward.1} parent=1 // pred_check_branch
      %15 = sbr.rel (0) target = $region9
    $region8: #{resnet_forward.1} parent=1 // pred_region
      _
    $region9: #{resnet_forward.1} parent=1 // pred_fallthru
      _
    // Predicated region
    $region10: #{resnet_forward.1} parent=1 // pred_check
      _
    $region11: #{resnet_forward.1} parent=1 // pred_check_branch
      %17 = sbr.rel (0) target = $region13
    $region12: #{resnet_forward.1} parent=1 // pred_region
      _
    $region13: #{resnet_forward.1} parent=1 // pred_fallthru
      _
    // Predicated region
    $region14: #{resnet_forward.1} parent=1 // pred_check
      _
    $region15: #{resnet_forward.1} parent=1 // pred_check_branch
      %19 = sbr.rel (0) target = $region17
    $region16: #{resnet_forward.1} parent=1 // pred_region
      _
    $region17: #{resnet_forward.1} parent=1 // pred_fallthru
      _
    // Predicated region
    $region18: #{resnet_forward.1} parent=1 // pred_check
      _
    $region19: #{resnet_forward.1} parent=1 // pred_check_branch
      %21 = sbr.rel (0) target = $region21
    $region20: #{resnet_forward.1} parent=1 // pred_region
      _
    $region21: #{resnet_forward.1} parent=1 // pred_fallthru
      _
    // Predicated region
    $region22: #{resnet_forward.1} parent=1 // pred_check
      _
    $region23: #{resnet_forward.1} parent=1 // pred_check_branch
      %23 = sbr.rel (0) target = $region25
    $region24: #{resnet_forward.1} parent=1 // pred_region
      _
    $region25: #{resnet_forward.1} parent=1 // pred_fallthru
      _
    %v24 = vld [vmem:[%s0] sm:$0xff]
    %v25 = vld [vmem:[%s0 + $0x8] sm:$0xff]
    %v26 = vld [vmem:[%s0 + $0x10] sm:$0xff]
    %v27 = vld [vmem:[%s0 + $0x18] sm:$0xff]
    %v28 = vld [vmem:[%s0 + $0x20] sm:$0xff]
    %v29 = vld [vmem:[%s0 + $0x28] sm:$0xff]
    %v30 = vld [vmem:[%s0 + $0x30] sm:$0xff]
    %v31 = vld [vmem:[%s0 + $0x38] sm:$0xff]
    %v32 = vld [vmem:[%s0 + $0x40] sm:$0xff]
    %v33 = vld [vmem:[%s0 + $0x48] sm:$0xff]
    %v34 = vld [vmem:[%s0 + $0x50] sm:$0xff]
    %v35 = vld [vmem:[%s0 + $0x58] sm:$0xff]
    %v36 = vld [vmem:[%s0 + $0x60] sm:$0xff]
    %v37 = vld [vmem:[%s0 + $0x68] sm:$0xff]
    %v38 = vld [vmem:[%s0 + $0x70] sm:$0xff]
    %v39 = vld [vmem:[%s0 + $0x78] sm:$0xff]
    %v40 = vld [vmem:[%s0 + $0x80] sm:$0xff]
    %v41 = vld [vmem:[%s0 + $0x88] sm:$0xff]
    %v42 = vld [vmem:[%s0 + $0x90] sm:$0xff]
    %v43 = vld [vmem:[%s0 + $0x98] sm:$0xff]
    %v44 = vld [vmem:[%s0 + $0xa0] sm:$0xff]
    %v45 = vld [vmem:[%s0 + $0xa8] sm:$0xff]
    %v46 = vld [vmem:[%s0 + $0xb0] sm:$0xff]
    %v47 = vld [vmem:[%s0 + $0xb8] sm:$0xff]
    %v48 = vld [vmem:[%s0 + $0xc0] sm:$0xff]
    %v49 = vld [vmem:[%s0 + $0xc8] sm:$0xff]
    %v50 = vld [vmem:[%s0 + $0xd0] sm:$0xff]
    %v51 = vld [vmem:[%s0 + $0xd8] sm:$0xff]
    %v52 = vld [vmem:[%s0 + $0xe0] sm:$0xff]
    %v53 = vld [vmem:[%s0 + $0xe8] sm:$0xff]
    %v54 = vld [vmem:[%s0 + $0xf0] sm:$0xff]
    %v55 = vld [vmem:[%s0 + $0xf8] sm:$0xff]
    %v56 = vld [vmem:[%s0 + $0x100] sm:$0xff]
    %v57 = vld [vmem:[%s0 + $0x108] sm:$0xff]
    %v58 = vld [vmem:[%s0 + $0x110] sm:$0xff]
    %v59 = vld [vmem:[%s0 + $0x118] sm:$0xff]
    %v60 = vld [vmem:[%s0 + $0x120] sm:$0xff]
    %v61 = vld [vmem:[%s0 + $0x128] sm:$0xff]
    %v62 = vld [vmem:[%s0 + $0x130] sm:$0xff]
    %v63 = vld [vmem:[%s0 + $0x138] sm:$0xff]
    %v64 = vld [vmem:[%s0 + $0x140] sm:$0xff]
    %v65 = vld [vmem:[%s0 + $0x148] sm:$0xff]
    %v66 = vld [vmem:[%s0 + $0x150] sm:$0xff]
    %v67 = vld [vmem:[%s0 + $0x158] sm:$0xff]
    %v68 = vld [vmem:[%s0 + $0x160] sm:$0xff]
    %v69 = vld [vmem:[%s0 + $0x168] sm:$0xff]
    %v70 = vld [vmem:[%s0 + $0x170] sm:$0xff]
    %v71 = vld [vmem:[%s0 + $0x178] sm:$0xff]
    %v72 = vld [vmem:[%s0 + $0x180] sm:$0xff]
    %v73 = vld [vmem:[%s0 + $0x188] sm:$0xff]
    %v74 = vld [vmem:[%s0 + $0x190] sm:$0xff]
    %v75 = vld [vmem:[%s0 + $0x198] sm:$0xff]
    %v76 = vld [vmem:[%s0 + $0x1a0] sm:$0xff]
    %v77 = vld [vmem:[%s0 + $0x1a8] sm:$0xff]
    %v78 = vld [vmem:[%s0 + $0x1b0] sm:$0xff]
    %v79 = vld [vmem:[%s0 + $0x1b8] sm:$0xff]
    %v80 = vld [vmem:[%s0 + $0x1c0] sm:$0xff]
    %v81 = vld [vmem:[%s0 + $0x1c8] sm:$0xff]
    %v82 = vld [vmem:[%s0 + $0x1d0] sm:$0xff]
    %v83 = vld [vmem:[%s0 + $0x1d8] sm:$0xff]
    %v84 = vld [vmem:[%s0 + $0x1e0] sm:$0xff]
    %v85 = vld [vmem:[%s0 + $0x1e8] sm:$0xff]
    %v86 = vld [vmem:[%s0 + $0x1f0] sm:$0xff]
    %v87 = vld [vmem:[%s0 + $0x1f8] sm:$0xff]
    %v88 = vld [vmem:[%s1] sm:$0xff]
    %v89 = vld [vmem:[%s1 + $0x8] sm:$0xff]
    %v90 = vld [vmem:[%s1 + $0x10] sm:$0xff]
    %v91 = vld [vmem:[%s1 + $0x18] sm:$0xff]
    %v92 = vld [vmem:[%s1 + $0x20] sm:$0xff]
    %v93 = vld [vmem:[%s2] sm:$0x1]
    %v95 = vperm.slane %v93, 0
    %vm97 = vcmask 326656
    %v99 = vsel %vm97, %v24, 0
    %v102 = vsel %vm97, %v25, 0
    %v105 = vsel %vm97, %v26, 0
    %v108 = vsel %vm97, %v27, 0
    %v111 = vsel %vm97, %v28, 0
    %v114 = vsel %vm97, %v29, 0
    %v117 = vsel %vm97, %v30, 0
    %v120 = vsel %vm97, %v31, 0
    %v123 = vsel %vm97, %v32, 0
    %v126 = vsel %vm97, %v33, 0
    %v129 = vsel %vm97, %v34, 0
    %v132 = vsel %vm97, %v35, 0
    %v135 = vsel %vm97, %v36, 0
    %v138 = vsel %vm97, %v37, 0
    %v141 = vsel %vm97, %v38, 0
    %v144 = vsel %vm97, %v39, 0
    %v147 = vsel %vm97, %v40, 0
    %v150 = vsel %vm97, %v41, 0
    %v153 = vsel %vm97, %v42, 0
    %v156 = vsel %vm97, %v43, 0
    %v159 = vsel %vm97, %v44, 0
    %v162 = vsel %vm97, %v45, 0
    %v165 = vsel %vm97, %v46, 0
    %v168 = vsel %vm97, %v47, 0
    %v171 = vsel %vm97, %v48, 0
    %v174 = vsel %vm97, %v49, 0
    %v177 = vsel %vm97, %v50, 0
    %v180 = vsel %vm97, %v51, 0
    %v183 = vsel %vm97, %v52, 0
    %v186 = vsel %vm97, %v53, 0
    %v189 = vsel %vm97, %v54, 0
    %v192 = vsel %vm97, %v55, 0
    %v195 = vsel %vm97, %v56, 0
    %v198 = vsel %vm97, %v57, 0
    %v201 = vsel %vm97, %v58, 0
    %v204 = vsel %vm97, %v59, 0
    %v207 = vsel %vm97, %v60, 0
    %v210 = vsel %vm97, %v61, 0
    %v213 = vsel %vm97, %v62, 0
    %v216 = vsel %vm97, %v63, 0
    %v219 = vsel %vm97, %v64, 0
    %v222 = vsel %vm97, %v65, 0
    %v225 = vsel %vm97, %v66, 0
    %v228 = vsel %vm97, %v67, 0
    %v231 = vsel %vm97, %v68, 0
    %v234 = vsel %vm97, %v69, 0
    %v237 = vsel %vm97, %v70, 0
    %v240 = vsel %vm97, %v71, 0
    %v243 = vsel %vm97, %v72, 0
    %v246 = vsel %vm97, %v73, 0
    %v249 = vsel %vm97, %v74, 0
    %v252 = vsel %vm97, %v75, 0
    %v255 = vsel %vm97, %v76, 0
    %v258 = vsel %vm97, %v77, 0
    %v261 = vsel %vm97, %v78, 0
    %v264 = vsel %vm97, %v79, 0
    %v267 = vsel %vm97, %v80, 0
    %v270 = vsel %vm97, %v81, 0
    %v273 = vsel %vm97, %v82, 0
    %v276 = vsel %vm97, %v83, 0
    %v279 = vsel %vm97, %v84, 0
    %v282 = vsel %vm97, %v85, 0
    %v285 = vsel %vm97, %v86, 0
    %v288 = vsel %vm97, %v87, 0
    %290 = vmatpush.msra.mxu0 0.0
    %291 = vmatpush.msra.mxu0 0.0
    %292 = vmatpush.msra.mxu0 0.0
    %293 = vmatpush.msra.mxu0 0.0
    %294 = vmatpush.msra.mxu0 0.0
    %295 = vmatpush.msra.mxu0 0.0
    %296 = vmatpush.msra.mxu0 0.0
    %297 = vmatpush.msra.mxu0 0.0
    %298 = vmatpush.msra.mxu0 0.0
    %299 = vmatpush.msra.mxu0 0.0
    %300 = vmatpush.msra.mxu0 0.0
    %301 = vmatpush.msra.mxu0 %v92
    %302 = vmatpush.msra.mxu0 %v91
    %303 = vmatpush.msra.mxu0 %v90
    %304 = vmatpush.msra.mxu0 %v89
    %305 = vmatpush.msra.mxu0 %v88
    %306 = vmatmul.f32.gmra.mxu0 %v99
    %v307 = vpop.f32.mrf.mxu0
    %v308 = vadd.f32 %v95, %v307
    %309 = vmatmul.f32.gmra.mxu0 %v102
    %v310 = vpop.f32.mrf.mxu0
    %v311 = vadd.f32 %v95, %v310
    %312 = vmatmul.f32.gmra.mxu0 %v105
    %v313 = vpop.f32.mrf.mxu0
    %v314 = vadd.f32 %v95, %v313
    %315 = vmatmul.f32.gmra.mxu0 %v108
    %v316 = vpop.f32.mrf.mxu0
    %v317 = vadd.f32 %v95, %v316
    %318 = vmatmul.f32.gmra.mxu0 %v111
    %v319 = vpop.f32.mrf.mxu0
    %v320 = vadd.f32 %v95, %v319
    %321 = vmatmul.f32.gmra.mxu0 %v114
    %v322 = vpop.f32.mrf.mxu0
    %v323 = vadd.f32 %v95, %v322
    %324 = vmatmul.f32.gmra.mxu0 %v117
    %v325 = vpop.f32.mrf.mxu0
    %v326 = vadd.f32 %v95, %v325
    %327 = vmatmul.f32.gmra.mxu0 %v120
    %v328 = vpop.f32.mrf.mxu0
    %v329 = vadd.f32 %v95, %v328
    %330 = vmatmul.f32.gmra.mxu0 %v123
    %v331 = vpop.f32.mrf.mxu0
    %v332 = vadd.f32 %v95, %v331
    %333 = vmatmul.f32.gmra.mxu0 %v126
    %v334 = vpop.f32.mrf.mxu0
    %v335 = vadd.f32 %v95, %v334
    %336 = vmatmul.f32.gmra.mxu0 %v129
    %v337 = vpop.f32.mrf.mxu0
    %v338 = vadd.f32 %v95, %v337
    %339 = vmatmul.f32.gmra.mxu0 %v132
    %v340 = vpop.f32.mrf.mxu0
    %v341 = vadd.f32 %v95, %v340
    %342 = vmatmul.f32.gmra.mxu0 %v135
    %v343 = vpop.f32.mrf.mxu0
    %v344 = vadd.f32 %v95, %v343
    %345 = vmatmul.f32.gmra.mxu0 %v138
    %v346 = vpop.f32.mrf.mxu0
    %v347 = vadd.f32 %v95, %v346
    %348 = vmatmul.f32.gmra.mxu0 %v141
    %v349 = vpop.f32.mrf.mxu0
    %v350 = vadd.f32 %v95, %v349
    %351 = vmatmul.f32.gmra.mxu0 %v144
    %v352 = vpop.f32.mrf.mxu0
    %v353 = vadd.f32 %v95, %v352
    %354 = vmatmul.f32.gmra.mxu0 %v147
    %v355 = vpop.f32.mrf.mxu0
    %v356 = vadd.f32 %v95, %v355
    %357 = vmatmul.f32.gmra.mxu0 %v150
    %v358 = vpop.f32.mrf.mxu0
    %v359 = vadd.f32 %v95, %v358
    %360 = vmatmul.f32.gmra.mxu0 %v153
    %v361 = vpop.f32.mrf.mxu0
    %v362 = vadd.f32 %v95, %v361
    %363 = vmatmul.f32.gmra.mxu0 %v156
    %v364 = vpop.f32.mrf.mxu0
    %v365 = vadd.f32 %v95, %v364
    %366 = vmatmul.f32.gmra.mxu0 %v159
    %v367 = vpop.f32.mrf.mxu0
    %v368 = vadd.f32 %v95, %v367
    %369 = vmatmul.f32.gmra.mxu0 %v162
    %v370 = vpop.f32.mrf.mxu0
    %v371 = vadd.f32 %v95, %v370
    %372 = vmatmul.f32.gmra.mxu0 %v165
    %v373 = vpop.f32.mrf.mxu0
    %v374 = vadd.f32 %v95, %v373
    %375 = vmatmul.f32.gmra.mxu0 %v168
    %v376 = vpop.f32.mrf.mxu0
    %v377 = vadd.f32 %v95, %v376
    %378 = vmatmul.f32.gmra.mxu0 %v171
    %v379 = vpop.f32.mrf.mxu0
    %v380 = vadd.f32 %v95, %v379
    %381 = vmatmul.f32.gmra.mxu0 %v174
    %v382 = vpop.f32.mrf.mxu0
    %v383 = vadd.f32 %v95, %v382
    %384 = vmatmul.f32.gmra.mxu0 %v177
    %v385 = vpop.f32.mrf.mxu0
    %v386 = vadd.f32 %v95, %v385
    %387 = vmatmul.f32.gmra.mxu0 %v180
    %v388 = vpop.f32.mrf.mxu0
    %v389 = vadd.f32 %v95, %v388
    %390 = vmatmul.f32.gmra.mxu0 %v183
    %v391 = vpop.f32.mrf.mxu0
    %v392 = vadd.f32 %v95, %v391
    %393 = vmatmul.f32.gmra.mxu0 %v186
    %v394 = vpop.f32.mrf.mxu0
    %v395 = vadd.f32 %v95, %v394
    %396 = vmatmul.f32.gmra.mxu0 %v189
    %v397 = vpop.f32.mrf.mxu0
    %v398 = vadd.f32 %v95, %v397
    %399 = vmatmul.f32.gmra.mxu0 %v192
    %v400 = vpop.f32.mrf.mxu0
    %v401 = vadd.f32 %v95, %v400
    %402 = vmatmul.f32.gmra.mxu0 %v195
    %v403 = vpop.f32.mrf.mxu0
    %v404 = vadd.f32 %v95, %v403
    %405 = vmatmul.f32.gmra.mxu0 %v198
    %v406 = vpop.f32.mrf.mxu0
    %v407 = vadd.f32 %v95, %v406
    %408 = vmatmul.f32.gmra.mxu0 %v201
    %v409 = vpop.f32.mrf.mxu0
    %v410 = vadd.f32 %v95, %v409
    %411 = vmatmul.f32.gmra.mxu0 %v204
    %v412 = vpop.f32.mrf.mxu0
    %v413 = vadd.f32 %v95, %v412
    %414 = vmatmul.f32.gmra.mxu0 %v207
    %v415 = vpop.f32.mrf.mxu0
    %v416 = vadd.f32 %v95, %v415
    %417 = vmatmul.f32.gmra.mxu0 %v210
    %v418 = vpop.f32.mrf.mxu0
    %v419 = vadd.f32 %v95, %v418
    %420 = vmatmul.f32.gmra.mxu0 %v213
    %v421 = vpop.f32.mrf.mxu0
    %v422 = vadd.f32 %v95, %v421
    %423 = vmatmul.f32.gmra.mxu0 %v216
    %v424 = vpop.f32.mrf.mxu0
    %v425 = vadd.f32 %v95, %v424
    %426 = vmatmul.f32.gmra.mxu0 %v219
    %v427 = vpop.f32.mrf.mxu0
    %v428 = vadd.f32 %v95, %v427
    %429 = vmatmul.f32.gmra.mxu0 %v222
    %v430 = vpop.f32.mrf.mxu0
    %v431 = vadd.f32 %v95, %v430
    %432 = vmatmul.f32.gmra.mxu0 %v225
    %v433 = vpop.f32.mrf.mxu0
    %v434 = vadd.f32 %v95, %v433
    %435 = vmatmul.f32.gmra.mxu0 %v228
    %v436 = vpop.f32.mrf.mxu0
    %v437 = vadd.f32 %v95, %v436
    %438 = vmatmul.f32.gmra.mxu0 %v231
    %v439 = vpop.f32.mrf.mxu0
    %v440 = vadd.f32 %v95, %v439
    %441 = vmatmul.f32.gmra.mxu0 %v234
    %v442 = vpop.f32.mrf.mxu0
    %v443 = vadd.f32 %v95, %v442
    %444 = vmatmul.f32.gmra.mxu0 %v237
    %v445 = vpop.f32.mrf.mxu0
    %v446 = vadd.f32 %v95, %v445
    %447 = vmatmul.f32.gmra.mxu0 %v240
    %v448 = vpop.f32.mrf.mxu0
    %v449 = vadd.f32 %v95, %v448
    %450 = vmatmul.f32.gmra.mxu0 %v243
    %v451 = vpop.f32.mrf.mxu0
    %v452 = vadd.f32 %v95, %v451
    %453 = vmatmul.f32.gmra.mxu0 %v246
    %v454 = vpop.f32.mrf.mxu0
    %v455 = vadd.f32 %v95, %v454
    %456 = vmatmul.f32.gmra.mxu0 %v249
    %v457 = vpop.f32.mrf.mxu0
    %v458 = vadd.f32 %v95, %v457
    %459 = vmatmul.f32.gmra.mxu0 %v252
    %v460 = vpop.f32.mrf.mxu0
    %v461 = vadd.f32 %v95, %v460
    %462 = vmatmul.f32.gmra.mxu0 %v255
    %v463 = vpop.f32.mrf.mxu0
    %v464 = vadd.f32 %v95, %v463
    %465 = vmatmul.f32.gmra.mxu0 %v258
    %v466 = vpop.f32.mrf.mxu0
    %v467 = vadd.f32 %v95, %v466
    %468 = vmatmul.f32.gmra.mxu0 %v261
    %v469 = vpop.f32.mrf.mxu0
    %v470 = vadd.f32 %v95, %v469
    %471 = vmatmul.f32.gmra.mxu0 %v264
    %v472 = vpop.f32.mrf.mxu0
    %v473 = vadd.f32 %v95, %v472
    %474 = vmatmul.f32.gmra.mxu0 %v267
    %v475 = vpop.f32.mrf.mxu0
    %v476 = vadd.f32 %v95, %v475
    %477 = vmatmul.f32.gmra.mxu0 %v270
    %v478 = vpop.f32.mrf.mxu0
    %v479 = vadd.f32 %v95, %v478
    %480 = vmatmul.f32.gmra.mxu0 %v273
    %v481 = vpop.f32.mrf.mxu0
    %v482 = vadd.f32 %v95, %v481
    %483 = vmatmul.f32.gmra.mxu0 %v276
    %v484 = vpop.f32.mrf.mxu0
    %v485 = vadd.f32 %v95, %v484
    %486 = vmatmul.f32.gmra.mxu0 %v279
    %v487 = vpop.f32.mrf.mxu0
    %v488 = vadd.f32 %v95, %v487
    %489 = vmatmul.f32.gmra.mxu0 %v282
    %v490 = vpop.f32.mrf.mxu0
    %v491 = vadd.f32 %v95, %v490
    %492 = vmatmul.f32.gmra.mxu0 %v285
    %v493 = vpop.f32.mrf.mxu0
    %v494 = vadd.f32 %v95, %v493
    %495 = vmatmul.f32.gmra.mxu0 %v288
    %v496 = vpop.f32.mrf.mxu0
    %v497 = vadd.f32 %v95, %v496
    %498 = vdwg.mxu0
    %v499 = vmax.f32 %v308, 0.0
    %v500 = vmax.f32 %v311, 0.0
    %v501 = vmax.f32 %v314, 0.0
    %v502 = vmax.f32 %v317, 0.0
    %v503 = vmax.f32 %v320, 0.0
    %v504 = vmax.f32 %v323, 0.0
    %v505 = vmax.f32 %v326, 0.0
    %v506 = vmax.f32 %v329, 0.0
    %v507 = vmax.f32 %v332, 0.0
    %v508 = vmax.f32 %v335, 0.0
    %v509 = vmax.f32 %v338, 0.0
    %v510 = vmax.f32 %v341, 0.0
    %v511 = vmax.f32 %v344, 0.0
    %v512 = vmax.f32 %v347, 0.0
    %v513 = vmax.f32 %v350, 0.0
    %v514 = vmax.f32 %v353, 0.0
    %v515 = vmax.f32 %v356, 0.0
    %v516 = vmax.f32 %v359, 0.0
    %v517 = vmax.f32 %v362, 0.0
    %v518 = vmax.f32 %v365, 0.0
    %v519 = vmax.f32 %v368, 0.0
    %v520 = vmax.f32 %v371, 0.0
    %v521 = vmax.f32 %v374, 0.0
    %v522 = vmax.f32 %v377, 0.0
    %v523 = vmax.f32 %v380, 0.0
    %v524 = vmax.f32 %v383, 0.0
    %v525 = vmax.f32 %v386, 0.0
    %v526 = vmax.f32 %v389, 0.0
    %v527 = vmax.f32 %v392, 0.0
    %v528 = vmax.f32 %v395, 0.0
    %v529 = vmax.f32 %v398, 0.0
    %v530 = vmax.f32 %v401, 0.0
    %v531 = vmax.f32 %v404, 0.0
    %v532 = vmax.f32 %v407, 0.0
    %v533 = vmax.f32 %v410, 0.0
    %v534 = vmax.f32 %v413, 0.0
    %v535 = vmax.f32 %v416, 0.0
    %v536 = vmax.f32 %v419, 0.0
    %v537 = vmax.f32 %v422, 0.0
    %v538 = vmax.f32 %v425, 0.0
    %v539 = vmax.f32 %v428, 0.0
    %v540 = vmax.f32 %v431, 0.0
    %v541 = vmax.f32 %v434, 0.0
    %v542 = vmax.f32 %v437, 0.0
    %v543 = vmax.f32 %v440, 0.0
    %v544 = vmax.f32 %v443, 0.0
    %v545 = vmax.f32 %v446, 0.0
    %v546 = vmax.f32 %v449, 0.0
    %v547 = vmax.f32 %v452, 0.0
    %v548 = vmax.f32 %v455, 0.0
    %v549 = vmax.f32 %v458, 0.0
    %v550 = vmax.f32 %v461, 0.0
    %v551 = vmax.f32 %v464, 0.0
    %v552 = vmax.f32 %v467, 0.0
    %v553 = vmax.f32 %v470, 0.0
    %v554 = vmax.f32 %v473, 0.0
    %v555 = vmax.f32 %v476, 0.0
    %v556 = vmax.f32 %v479, 0.0
    %v557 = vmax.f32 %v482, 0.0
    %v558 = vmax.f32 %v485, 0.0
    %v559 = vmax.f32 %v488, 0.0
    %v560 = vmax.f32 %v491, 0.0
    %v561 = vmax.f32 %v494, 0.0
    %v562 = vmax.f32 %v497, 0.0
    %v563 = vld [vmem:[%s3] sm:$0xff]
    %565 = vst [vmem:[#allocation1] ss:$4 sm:$0xff] %v563
    %v566 = vld.sshfl [vmem:[#allocation1] sm:$0xff pattern:$0x73625140]
    %v567 = vld.sshfl [vmem:[#allocation1 + $0x8] sm:$0xff pattern:$0x73625140]
    %v568 = vld.sshfl [vmem:[#allocation1 + $0x10] sm:$0xff pattern:$0x73625140]
    %v569 = vld.sshfl [vmem:[#allocation1 + $0x18] sm:$0xff pattern:$0x73625140]
    %574 = vmatpush.msra.mxu0 %v514
    %575 = vmatpush.msra.mxu0 %v513
    %576 = vmatpush.msra.mxu0 %v512
    %577 = vmatpush.msra.mxu0 %v511
    %578 = vmatpush.msra.mxu0 %v510
    %579 = vmatpush.msra.mxu0 %v509
    %580 = vmatpush.msra.mxu0 %v508
    %581 = vmatpush.msra.mxu0 %v507
    %582 = vmatpush.msra.mxu0 %v506
    %583 = vmatpush.msra.mxu0 %v505
    %584 = vmatpush.msra.mxu0 %v504
    %585 = vmatpush.msra.mxu0 %v503
    %586 = vmatpush.msra.mxu0 %v502
    %587 = vmatpush.msra.mxu0 %v501
    %588 = vmatpush.msra.mxu0 %v500
    %589 = vmatpush.msra.mxu0 %v499
    %590 = vmatmul.f32.gmra.mxu0 %v566
    %v591 = vpop.f32.mrf.mxu0
    %v592 = vadd.f32 0.0, %v591
    %593 = vdwg.mxu0
    %594 = vmatpush.msra.mxu0 %v530
    %595 = vmatpush.msra.mxu0 %v529
    %596 = vmatpush.msra.mxu0 %v528
    %597 = vmatpush.msra.mxu0 %v527
    %598 = vmatpush.msra.mxu0 %v526
    %599 = vmatpush.msra.mxu0 %v525
    %600 = vmatpush.msra.mxu0 %v524
    %601 = vmatpush.msra.mxu0 %v523
    %602 = vmatpush.msra.mxu0 %v522
    %603 = vmatpush.msra.mxu0 %v521
    %604 = vmatpush.msra.mxu0 %v520
    %605 = vmatpush.msra.mxu0 %v519
    %606 = vmatpush.msra.mxu0 %v518
    %607 = vmatpush.msra.mxu0 %v517
    %608 = vmatpush.msra.mxu0 %v516
    %609 = vmatpush.msra.mxu0 %v515
    %610 = vmatmul.f32.gmra.mxu0 %v567
    %v611 = vpop.f32.mrf.mxu0
    %v612 = vadd.f32 %v592, %v611
    %613 = vdwg.mxu0
    %614 = vmatpush.msra.mxu0 %v546
    %615 = vmatpush.msra.mxu0 %v545
    %616 = vmatpush.msra.mxu0 %v544
    %617 = vmatpush.msra.mxu0 %v543
    %618 = vmatpush.msra.mxu0 %v542
    %619 = vmatpush.msra.mxu0 %v541
    %620 = vmatpush.msra.mxu0 %v540
    %621 = vmatpush.msra.mxu0 %v539
    %622 = vmatpush.msra.mxu0 %v538
    %623 = vmatpush.msra.mxu0 %v537
    %624 = vmatpush.msra.mxu0 %v536
    %625 = vmatpush.msra.mxu0 %v535
    %626 = vmatpush.msra.mxu0 %v534
    %627 = vmatpush.msra.mxu0 %v533
    %628 = vmatpush.msra.mxu0 %v532
    %629 = vmatpush.msra.mxu0 %v531
    %630 = vmatmul.f32.gmra.mxu0 %v568
    %v631 = vpop.f32.mrf.mxu0
    %v632 = vadd.f32 %v612, %v631
    %633 = vdwg.mxu0
    %634 = vmatpush.msra.mxu0 %v562
    %635 = vmatpush.msra.mxu0 %v561
    %636 = vmatpush.msra.mxu0 %v560
    %637 = vmatpush.msra.mxu0 %v559
    %638 = vmatpush.msra.mxu0 %v558
    %639 = vmatpush.msra.mxu0 %v557
    %640 = vmatpush.msra.mxu0 %v556
    %641 = vmatpush.msra.mxu0 %v555
    %642 = vmatpush.msra.mxu0 %v554
    %643 = vmatpush.msra.mxu0 %v553
    %644 = vmatpush.msra.mxu0 %v552
    %645 = vmatpush.msra.mxu0 %v551
    %646 = vmatpush.msra.mxu0 %v550
    %647 = vmatpush.msra.mxu0 %v549
    %648 = vmatpush.msra.mxu0 %v548
    %649 = vmatpush.msra.mxu0 %v547
    %650 = vmatmul.f32.gmra.mxu0 %v569
    %v651 = vpop.f32.mrf.mxu0
    %v652 = vadd.f32 %v632, %v651
    %653 = vdwg.mxu0
    %v654 = vld [vmem:[%s4] sm:$0xff]
    %v655 = vld [vmem:[%s4 + $0x8] sm:$0xff]
    %v656 = vld [vmem:[%s4 + $0x10] sm:$0xff]
    %v657 = vld [vmem:[%s4 + $0x18] sm:$0xff]
    %v658 = vld [vmem:[%s4 + $0x20] sm:$0xff]
    %v659 = vld [vmem:[%s4 + $0x28] sm:$0xff]
    %v660 = vld [vmem:[%s4 + $0x30] sm:$0xff]
    %v661 = vld [vmem:[%s4 + $0x38] sm:$0xff]
    %v662 = vld [vmem:[%s4 + $0x40] sm:$0xff]
    %v663 = vld [vmem:[%s4 + $0x48] sm:$0xff]
    %v664 = vld [vmem:[%s4 + $0x50] sm:$0xff]
    %v665 = vld [vmem:[%s4 + $0x58] sm:$0xff]
    %v666 = vld [vmem:[%s4 + $0x60] sm:$0xff]
    %v667 = vld [vmem:[%s4 + $0x68] sm:$0xff]
    %v668 = vld [vmem:[%s4 + $0x70] sm:$0xff]
    %v669 = vld [vmem:[%s4 + $0x78] sm:$0xff]
    %v670 = vld [vmem:[%s5] sm:$0x1]
    %v672 = vperm.slane %v670, 0
    %674 = vmatpush.msra.mxu0 %v669
    %675 = vmatpush.msra.mxu0 %v668
    %676 = vmatpush.msra.mxu0 %v667
    %677 = vmatpush.msra.mxu0 %v666
    %678 = vmatpush.msra.mxu0 %v665
    %679 = vmatpush.msra.mxu0 %v664
    %680 = vmatpush.msra.mxu0 %v663
    %681 = vmatpush.msra.mxu0 %v662
    %682 = vmatpush.msra.mxu0 %v661
    %683 = vmatpush.msra.mxu0 %v660
    %684 = vmatpush.msra.mxu0 %v659
    %685 = vmatpush.msra.mxu0 %v658
    %686 = vmatpush.msra.mxu0 %v657
    %687 = vmatpush.msra.mxu0 %v656
    %688 = vmatpush.msra.mxu0 %v655
    %689 = vmatpush.msra.mxu0 %v654
    %690 = vmatmul.f32.gmra.mxu0 %v652
    %v691 = vpop.f32.mrf.mxu0
    %v692 = vadd.f32 %v672, %v691
    %693 = vdwg.mxu0
    %694 = vst [vmem:[#allocation2] sm:$0x3] %v692
    // Predicated region
    $region26: #{resnet_forward.1} parent=1 // pred_check
      _
    $region27: #{resnet_forward.1} parent=1 // pred_check_branch
      %696 = sbr.rel (0) target = $region29
    $region28: #{resnet_forward.1} parent=1 // pred_region
      %698 = vsyncadd [#allocation3], 0
      %s700 = sshll.u32 [#allocation2], 4
      %s701 = int_to_ptr.vmem [resolvable:$true] %s700
      %s702 = sshll.u32 %s6, 4
      %s703 = int_to_ptr.hbm [resolvable:$true] %s702
      %705 = dma.vmem_to_hbm [thread:$0]  %s701, 32, %s703, [#allocation3]
    $region29: #{resnet_forward.1} parent=1 // pred_fallthru
      _
    // Predicated region
    $region30: #{resnet_forward.1} parent=1 // pred_check
      _
    $region31: #{resnet_forward.1} parent=1 // pred_check_branch
      %707 = sbr.rel (0) target = $region33
    $region32: #{resnet_forward.1} parent=1 // pred_region
      %709 = dma.done [#allocation3], 32
    $region33: #{resnet_forward.1} parent=1 // pred_fallthru
      _
    %710 = vsyncpa [#allocation3], 1

</llo_original>
